<compile_context>
chip_gen: v7x
topology: tpu7x:2x2x1
jax: 0.10.0
libtpu: 0.0.40
codegen_flags: <defaults>
</compile_context>

<pallas_src>
import functools

import jax
import jax.numpy as jnp
from jax.experimental import pallas as pl
from jax.experimental.pallas import tpu as pltpu


def _cdiv(a, b):
    return -(-a // b)


def _round_up(x, m):
    return ((x + m - 1) // m) * m


def _patch_proj_kernel(patches_ref, w_ref, b_ref, out_ref):
    # patches_ref: (tm, K), w_ref: (K, H), b_ref: (1, H) f32, out_ref: (tm, H)
    acc = jnp.dot(patches_ref[...], w_ref[...],
                  preferred_element_type=jnp.float32)
    out_ref[...] = (acc + b_ref[...]).astype(out_ref.dtype)


def _patch_projection(patches, w2d, b2d, *, tm, out_dtype):
    """(M, K) @ (K, H) + (1, H) -> (M, H), tiled over M only."""
    M, K = patches.shape
    K2, H = w2d.shape
    assert K2 == K

    # --- tile selection -----------------------------------------------------
    # Force >= 2 reasonably even grid steps when there is enough work so both
    # v7x TensorCores get a block; otherwise use one full-array block.  Tiles
    # are multiples of 128 rows (also satisfies bf16 sublane packing); the
    # ragged last block is masked by Pallas (cdiv grid, no jnp.pad copies).
    if M > 512:
        tm = min(tm, _round_up(_cdiv(M, 2), 128))
    if tm >= M:
        tm_eff = M                       # single step; full-dim block is legal
    else:
        steps = _cdiv(M, tm)
        tm_eff = min(tm, _round_up(_cdiv(M, steps), 128))
    grid_m = _cdiv(M, tm_eff)

    flops = 2 * M * K * H
    bytes_accessed = (patches.size * patches.dtype.itemsize
                      + w2d.size * w2d.dtype.itemsize
                      + b2d.size * b2d.dtype.itemsize
                      + M * H * jnp.dtype(out_dtype).itemsize)

    return pl.pallas_call(
        _patch_proj_kernel,
        out_shape=jax.ShapeDtypeStruct((M, H), out_dtype),
        grid=(grid_m,),
        in_specs=[
            pl.BlockSpec((tm_eff, K), lambda i: (i, 0)),
            pl.BlockSpec((K, H), lambda i: (0, 0)),   # constant -> VMEM resident
            pl.BlockSpec((1, H), lambda i: (0, 0)),
        ],
        out_specs=pl.BlockSpec((tm_eff, H), lambda i: (i, 0)),
        compiler_params=pltpu.CompilerParams(
            dimension_semantics=("parallel",)),
        cost_estimate=pl.CostEstimate(
            flops=flops, transcendentals=0, bytes_accessed=bytes_accessed),
    )(patches, w2d, b2d)


def prepare_projection_params(weight, bias, *, compute_dtype=jnp.bfloat16):
    """Fold Conv2d params into matmul form.  Hoist this out of the hot path.

    weight: (hidden, 1, p, p) PyTorch Conv2d layout -> (K, hidden), K = p*p
            flattened (c=1, kh, kw) == weight.reshape(hidden, K) column order.
    bias:   (hidden,) -> (1, hidden) float32 (bias is added in f32 in-kernel).
    """
    hidden = weight.shape[0]
    K = weight.shape[1] * weight.shape[2] * weight.shape[3]
    w2d = jnp.transpose(weight.reshape(hidden, K), (1, 0))
    if compute_dtype is not None:
        w2d = w2d.astype(compute_dtype)
    b2d = bias.reshape(1, hidden).astype(jnp.float32)
    return w2d, b2d


def ast_patch_embeddings(input_values, weight, bias, *, patch_size,
                         frequency_stride, time_stride, tm=1024,
                         compute_dtype=jnp.bfloat16, out_dtype=None,
                         projection_params=None):
    """JAX/Pallas equivalent of ASTPatchEmbeddings.forward.

    input_values: (B, time, freq) float32
    weight:       (hidden, 1, p, p)  (PyTorch Conv2d weight layout)
    bias:         (hidden,)
    returns:      (B, seq, hidden) in `out_dtype` (default: compute_dtype,
                  i.e. bf16; pass out_dtype=jnp.float32 / compute_dtype=None
                  for full-f32 module semantics).
    """
    B, T, F = input_values.shape
    hidden = weight.shape[0]
    p = patch_size

    f_out = (F - p) // frequency_stride + 1
    t_out = (T - p) // time_stride + 1
    seq = f_out * t_out
    M = B * seq
    K = p * p

    if compute_dtype is None:
        compute_dtype = input_values.dtype
    if out_dtype is None:
        out_dtype = compute_dtype

    # Cast early: the im2col buffer is the largest pre-kernel HBM stream.
    x = input_values.astype(compute_dtype)

    # (B, time, freq) -> (B, freq, time, 1): spatial = (freq, time), matching
    # the module's transpose(2, 3) before the Conv2d.
    x_nhwc = jnp.transpose(x, (0, 2, 1))[:, :, :, None]

    # im2col with the feature dim last.  Feature order is (c=1, kh, kw) ==
    # PyTorch Conv2d weight flatten order; rows come out (b, f_out, t_out)
    # row-major == the module's flatten(2) sequence order.
    patches = jax.lax.conv_general_dilated_patches(
        x_nhwc,
        filter_shape=(p, p),
        window_strides=(frequency_stride, time_stride),
        padding="VALID",
        dimension_numbers=("NHWC", "HWIO", "NHWC"),
    ).reshape(M, K)

    if projection_params is None:
        projection_params = prepare_projection_params(
            weight, bias, compute_dtype=compute_dtype)
    w2d, b2d = projection_params

    out = _patch_projection(patches, w2d, b2d, tm=tm, out_dtype=out_dtype)
    return out.reshape(B, seq, hidden)


if __name__ == "__main__":
    # Small config consistent with the module.
    patch_size = 4
    frequency_stride = 4
    time_stride = 4
    hidden_size = 32
    B, T, F = 2, 24, 16  # (batch, time, frequency) -> f_out=4, t_out=6, M=48

    key = jax.random.PRNGKey(0)
    k_x, k_w, k_b = jax.random.split(key, 3)
    input_values = jax.random.normal(k_x, (B, T, F), dtype=jnp.float32)
    weight = jax.random.normal(
        k_w, (hidden_size, 1, patch_size, patch_size), dtype=jnp.float32) * 0.02
    bias = jax.random.normal(k_b, (hidden_size,), dtype=jnp.float32) * 0.02

    fn = functools.partial(
        ast_patch_embeddings,
        patch_size=patch_size,
        frequency_stride=frequency_stride,
        time_stride=time_stride,
    )
    out = jax.block_until_ready(jax.jit(fn)(input_values, weight, bias))

    # Also exercise the multi-step grid with a ragged last block (M=48, tm=32).
    fn_ragged = functools.partial(fn, tm=32)
    out_ragged = jax.block_until_ready(
        jax.jit(fn_ragged)(input_values, weight, bias))

    # References via lax conv with the module's NCHW layout.
    f_out = (F - patch_size) // frequency_stride + 1
    t_out = (T - patch_size) // time_stride + 1
    seq = f_out * t_out
    x_nchw = jnp.transpose(input_values, (0, 2, 1))[:, None, :, :]

    def conv_ref(x, w, acc_dtype=None):
        y = jax.lax.conv_general_dilated(
            x, w, window_strides=(frequency_stride, time_stride),
            padding="VALID", dimension_numbers=("NCHW", "OIHW", "NCHW"),
            preferred_element_type=acc_dtype)
        y = y.astype(jnp.float32) + bias[None, :, None, None]
        return jnp.transpose(y.reshape(B, hidden_size, seq), (0, 2, 1))

    ref_f32 = conv_ref(x_nchw, weight)                                   # full f32
    ref_bf16 = conv_ref(x_nchw.astype(jnp.bfloat16),                     # matched precision
                        weight.astype(jnp.bfloat16), acc_dtype=jnp.float32)

    out_f32 = out.astype(jnp.float32)
    assert out.shape == (B, seq, hidden_size), (out.shape, (B, seq, hidden_size))
    assert out.dtype == jnp.bfloat16, out.dtype
    assert jnp.allclose(out_f32, ref_bf16, atol=1e-2, rtol=1e-2), (
        float(jnp.max(jnp.abs(out_f32 - ref_bf16))))
    assert jnp.allclose(out_f32, ref_f32, atol=3e-2, rtol=3e-2), (
        float(jnp.max(jnp.abs(out_f32 - ref_f32))))
    assert jnp.allclose(out_ragged.astype(jnp.float32), out_f32,
                        atol=1e-3, rtol=1e-3), "tiling changed the result"
    print("KERNEL_OK")
</pallas_src>

<mosaic_0001>
module attributes {stable_mosaic.version = 11 : i64} {
  func.func @_patch_proj_kernel(%arg0: i32, %arg1: memref<48x16xbf16, #tpu.memory_space<vmem>>, %arg2: memref<16x32xbf16, #tpu.memory_space<vmem>>, %arg3: memref<1x32xf32, #tpu.memory_space<vmem>>, %arg4: memref<48x32xbf16, #tpu.memory_space<vmem>>) attributes {dimension_semantics = [#tpu.dimension_semantics<parallel>], iteration_bounds = array<i64: 1>, scalar_prefetch = 0 : i64, scratch_operands = 0 : i64, tpu.core_type = #tpu.core_type<tc>, window_params = [{transform_indices = @transform_0, window_bounds = array<i64: 48, 16>}, {pipeline_mode = #tpu.pipeline_mode<synchronous>, transform_indices = @transform_1, window_bounds = array<i64: 16, 32>}, {pipeline_mode = #tpu.pipeline_mode<synchronous>, transform_indices = @transform_2, window_bounds = array<i64: 1, 32>}, {transform_indices = @transform_3, window_bounds = array<i64: 48, 32>}]} {
    %c0 = arith.constant 0 : index
    %c0_0 = arith.constant 0 : index
    %0 = vector.load %arg1[%c0, %c0_0] : memref<48x16xbf16, #tpu.memory_space<vmem>>, vector<48x16xbf16>
    %c0_1 = arith.constant 0 : index
    %c0_2 = arith.constant 0 : index
    %1 = vector.load %arg2[%c0_1, %c0_2] : memref<16x32xbf16, #tpu.memory_space<vmem>>, vector<16x32xbf16>
    %cst = arith.constant dense<0.000000e+00> : vector<48x32xf32>
    %2 = tpu.matmul %0, %1, %cst {dimension_numbers = #tpu.dot_dimension_numbers<[1], [0], [0], [1], [0, 0, 1, 1], [], []>} : vector<48x16xbf16>, vector<16x32xbf16>, vector<48x32xf32> -> vector<48x32xf32>
    %c0_3 = arith.constant 0 : index
    %c0_4 = arith.constant 0 : index
    %3 = vector.load %arg3[%c0_3, %c0_4] : memref<1x32xf32, #tpu.memory_space<vmem>>, vector<1x32xf32>
    %4 = vector.broadcast %3 : vector<1x32xf32> to vector<48x32xf32>
    %5 = arith.addf %2, %4 : vector<48x32xf32>
    %6 = arith.truncf %5 : vector<48x32xf32> to vector<48x32xbf16>
    %c0_5 = arith.constant 0 : index
    %c0_6 = arith.constant 0 : index
    %7 = vector.load %arg4[%c0_5, %c0_6] : memref<48x32xbf16, #tpu.memory_space<vmem>>, vector<48x32xbf16>
    tpu.vector_store %arg4[%c0_5, %c0_6], %6 {strides = array<i32>} : memref<48x32xbf16, #tpu.memory_space<vmem>>, vector<48x32xbf16>,
    return
  }
  func.func @transform_0(%arg0: i32) -> (i32, i32) {
    %c0_i32 = arith.constant 0 : i32
    %c0_i32_0 = arith.constant 0 : i32
    return %arg0, %c0_i32 : i32, i32
  }
  func.func @transform_1(%arg0: i32) -> (i32, i32) {
    %c0_i32 = arith.constant 0 : i32
    %c0_i32_0 = arith.constant 0 : i32
    %c0_i32_1 = arith.constant 0 : i32
    return %c0_i32, %c0_i32_0 : i32, i32
  }
  func.func @transform_2(%arg0: i32) -> (i32, i32) {
    %c0_i32 = arith.constant 0 : i32
    %c0_i32_0 = arith.constant 0 : i32
    %c0_i32_1 = arith.constant 0 : i32
    return %c0_i32, %c0_i32_0 : i32, i32
  }
  func.func @transform_3(%arg0: i32) -> (i32, i32) {
    %c0_i32 = arith.constant 0 : i32
    %c0_i32_0 = arith.constant 0 : i32
    return %arg0, %c0_i32 : i32, i32
  }
}

</mosaic_0001>

<llo_original>
// kernel: ast_patch_embeddings.1
$region0: #{ast_patch_embeddings.1}
  #allocation0 [shape = 'u32[]', space=smem, size = 0x4, offset = 0x4, fixed_abs, tag = 'smem constant byte address 0x4 - core index']
  #allocation1 [shape = 'u32[144,128]{1,0:T(1,128)}', space=vmem, size = 0x12000, scoped, tag = 'internal scratch']
  %s0 = inlined_call_operand.vmem [shape: bf16[48,16], index: 0, kind: input, shape index: {}]
  %s1 = inlined_call_operand.vmem [shape: bf16[16,32], index: 1, kind: input, shape index: {}]
  %s2 = inlined_call_operand.vmem [shape: f32[1,32], index: 2, kind: input, shape index: {}]
  %s3 = inlined_call_operand.hbm [shape: bf16[48,32], index: 3, kind: output, shape index: {}]
  %s4 = sld [smem:[#allocation0]]
  $region22: #{ast_patch_embeddings.1} parent=0
    _
  %s6 = ssub.s32 1, %s4
  %s7 = scalar_select 0, %s6, %s4
  $region1: #{ast_patch_embeddings.1} parent=0
    #allocation2 [shape = 'u8[12288]{0}', space=vmem, size = 0x3000, scoped, tag = 'output window, operand 0, single buffered']
    #allocation3 [shape = 's32[1]{0}', space=sflag, size = 0x4, scoped, tag = 'scoped memory for ast_patch_embeddings.1']
    %8 = vsyncpa [#allocation3], 0
    // Predicated region
    $region2: #{ast_patch_embeddings.1} parent=1 // pred_check
      _
    $region3: #{ast_patch_embeddings.1} parent=1 // pred_check_branch
      %10 = sbr.rel (0) target = $region5
    $region4: #{ast_patch_embeddings.1} parent=1 // pred_region
      _
    $region5: #{ast_patch_embeddings.1} parent=1 // pred_fallthru
      _
    // Predicated region
    $region6: #{ast_patch_embeddings.1} parent=1 // pred_check
      _
    $region7: #{ast_patch_embeddings.1} parent=1 // pred_check_branch
      %12 = sbr.rel (0) target = $region9
    $region8: #{ast_patch_embeddings.1} parent=1 // pred_region
      _
    $region9: #{ast_patch_embeddings.1} parent=1 // pred_fallthru
      _
    // Predicated region
    $region10: #{ast_patch_embeddings.1} parent=1 // pred_check
      _
    $region11: #{ast_patch_embeddings.1} parent=1 // pred_check_branch
      %14 = sbr.rel (0) target = $region13
    $region12: #{ast_patch_embeddings.1} parent=1 // pred_region
      _
    $region13: #{ast_patch_embeddings.1} parent=1 // pred_fallthru
      _
    %v16 = vld [vmem:[%s0] sm:$0xf]
    %v17 = vld [vmem:[%s0 + $0x4] sm:$0xf]
    %v18 = vld [vmem:[%s0 + $0x8] sm:$0xf]
    %v19 = vld [vmem:[%s0 + $0xc] sm:$0xf]
    %v20 = vld [vmem:[%s0 + $0x10] sm:$0xf]
    %v21 = vld [vmem:[%s0 + $0x14] sm:$0xf]
    %v22 = vld [vmem:[%s1] sm:$0xf]
    %v23 = vld [vmem:[%s1 + $0x4] sm:$0xf]
    %v24 = vld [vmem:[%s2] sm:$0x1]
    %v26 = vlaneseq
    %v27 = vshrl.u32 %v26, 7
    %v28 = vsub.s32 0, %v27
    %v29 = vrot.slane %v24, %v28
    %v37 = vunpack.c.l.b16 %v16
    %v38 = vunpack.c.l.b16 %v17
    %v39 = vunpack.c.l.b16 %v18
    %v40 = vunpack.c.l.b16 %v19
    %v41 = vunpack.c.l.b16 %v20
    %v42 = vunpack.c.l.b16 %v21
    %v43 = vpack.c.b16 %v38, %v37
    %v44 = vpack.c.b16 %v40, %v39
    %v45 = vpack.c.b16 %v42, %v41
    %v48 = vunpack.c.l.b16 %v22
    %v49 = vunpack.c.l.b16 %v23
    %v50 = vpack.c.b16 %v49, %v48
    %vm52 = vcmask 130048
    %v54 = vsel %vm52, %v43, 0
    %v57 = vsel %vm52, %v44, 0
    %v60 = vsel %vm52, %v45, 0
    %62 = vmatprep.subr.bf16.mxu0 0
    %63 = vmatpush1.bf16.msra.mxu0 %v50
    %64 = vmatprep.subr.bf16.mxu0 0
    %65 = vmatpush1.bf16.msra.mxu0 0
    %66 = vmatprep.subr.bf16.mxu0 0
    %67 = vmatpush1.bf16.msra.mxu0 0
    %68 = vmatprep.subr.bf16.mxu0 0
    %69 = vmatpush1.bf16.msra.mxu0 0
    %70 = vmatprep.subr.bf16.mxu0 0
    %71 = vmatpush1.bf16.msra.mxu0 0
    %72 = vmatprep.subr.bf16.mxu0 0
    %73 = vmatpush1.bf16.msra.mxu0 0
    %74 = vmatprep.subr.bf16.mxu0 0
    %75 = vmatpush1.bf16.msra.mxu0 0
    %76 = vmatprep.subr.bf16.mxu0 0
    %77 = vmatpush1.bf16.msra.mxu0 0
    %78 = vmatprep.subr.bf16.mxu0 0
    %79 = vmatpush1.bf16.msra.mxu0 0
    %80 = vmatprep.subr.bf16.mxu0 0
    %81 = vmatpush1.bf16.msra.mxu0 0
    %82 = vmatprep.subr.bf16.mxu0 0
    %83 = vmatpush1.bf16.msra.mxu0 0
    %84 = vmatprep.subr.bf16.mxu0 0
    %85 = vmatpush1.bf16.msra.mxu0 0
    %86 = vmatprep.subr.bf16.mxu0 0
    %87 = vmatpush1.bf16.msra.mxu0 0
    %88 = vmatprep.subr.bf16.mxu0 0
    %89 = vmatpush1.bf16.msra.mxu0 0
    %90 = vmatprep.subr.bf16.mxu0 0
    %91 = vmatpush1.bf16.msra.mxu0 0
    %92 = vmatprep.subr.bf16.mxu0 0
    %93 = vmatpush1.bf16.msra.mxu0 0
    %94 = vmatprep.mubr.bf16.mxu0 0
    %95 = vmatmul.mubr.bf16.gmra.mrb[0].mxu0 %v54
    %v96 = vpop.f32.mrb[0].mxu0
    %v97 = vadd.f32 %v29, %v96
    %v98 = vpop.f32.mrb[0].mxu0
    %v99 = vpop.f32.mrb[0].mxu0
    %v100 = vadd.f32 %v29, %v99
    %v101 = vpop.f32.mrb[0].mxu0
    %102 = vmatprep.mubr.bf16.mxu0 0
    %103 = vmatmul.mubr.bf16.gmra.mrb[0].mxu0 %v57
    %v104 = vpop.f32.mrb[0].mxu0
    %v105 = vadd.f32 %v29, %v104
    %v106 = vpop.f32.mrb[0].mxu0
    %v107 = vpop.f32.mrb[0].mxu0
    %v108 = vadd.f32 %v29, %v107
    %v109 = vpop.f32.mrb[0].mxu0
    %110 = vmatprep.mubr.bf16.mxu0 0
    %111 = vmatmul.mubr.bf16.gmra.mrb[0].mxu0 %v60
    %v112 = vpop.f32.mrb[0].mxu0
    %v113 = vadd.f32 %v29, %v112
    %v114 = vpop.f32.mrb[0].mxu0
    %v115 = vpop.f32.mrb[0].mxu0
    %v116 = vadd.f32 %v29, %v115
    %v117 = vpop.f32.mrb[0].mxu0
    %118 = vdwg.mxu0
    %v119 = vpack.c.bf16 %v100, %v97
    %v120 = vpack.c.bf16 %v108, %v105
    %v121 = vpack.c.bf16 %v116, %v113
    %v125 = vunpack.c.l.b16 %v119
    %v126 = vunpack.c.h.b16 %v119
    %v127 = vunpack.c.l.b16 %v120
    %v128 = vunpack.c.h.b16 %v120
    %v129 = vunpack.c.l.b16 %v121
    %v130 = vunpack.c.h.b16 %v121
    %v131 = vpack.c.b16 %v125, %v125
    %v132 = vpack.c.b16 %v126, %v126
    %v133 = vpack.c.b16 %v127, %v127
    %v134 = vpack.c.b16 %v128, %v128
    %v135 = vpack.c.b16 %v129, %v129
    %v136 = vpack.c.b16 %v130, %v130
    %vm143 = vcmask 257024
    %144 = vst.msk [vmem:[#allocation2] sm:$0xf] %vm143, %v131
    %145 = vst.msk [vmem:[#allocation2 + $0x4] sm:$0xf] %vm143, %v132
    %146 = vst.msk [vmem:[#allocation2 + $0x8] sm:$0xf] %vm143, %v133
    %147 = vst.msk [vmem:[#allocation2 + $0xc] sm:$0xf] %vm143, %v134
    %148 = vst.msk [vmem:[#allocation2 + $0x10] sm:$0xf] %vm143, %v135
    %149 = vst.msk [vmem:[#allocation2 + $0x14] sm:$0xf] %vm143, %v136
    // Predicated region
    $region14: #{ast_patch_embeddings.1} parent=1 // pred_check
      _
    $region15: #{ast_patch_embeddings.1} parent=1 // pred_check_branch
      %151 = sbr.rel (0) target = $region17
    $region16: #{ast_patch_embeddings.1} parent=1 // pred_region
      %s153 = ssub.s32 384, 384
      %154 = vsyncadd [#allocation3], %s153
      %s155 = sshll.u32 [#allocation2], 4
      %s156 = int_to_ptr.vmem [resolvable:$true] %s155
      %161 = dma.vmem_to_hbm [thread:$0]  %s156, 384, %s3, [#allocation3], 64, 64, 4
    $region17: #{ast_patch_embeddings.1} parent=1 // pred_fallthru
      _
    // Predicated region
    $region18: #{ast_patch_embeddings.1} parent=1 // pred_check
      _
    $region19: #{ast_patch_embeddings.1} parent=1 // pred_check_branch
      %163 = sbr.rel (0) target = $region21
    $region20: #{ast_patch_embeddings.1} parent=1 // pred_region
      %164 = dma.done [#allocation3], 384
    $region21: #{ast_patch_embeddings.1} parent=1 // pred_fallthru
      _
    %165 = vsyncpa [#allocation3], 1

</llo_original>
